<compile_context>
chip_gen: v5e
topology: v5e:2x2
jax: 0.10.0
libtpu: 0.0.40
codegen_flags: <defaults>
</compile_context>

<pallas_src>
import math

import jax
import jax.numpy as jnp
from jax.experimental import pallas as pl
from jax.experimental.pallas import tpu as pltpu


# Whole-array-in-VMEM spec (used with grid-less pallas_calls).
_VMEM = pl.BlockSpec(memory_space=pltpu.MemorySpace.VMEM)


# ---------------------------------------------------------------------------
# Kernel 1:  out = x @ w + b   (hoisted input projection and MDN fc head).
# Shapes in this script are tiny, so a single invocation with whole-array VMEM
# blocks is the right tiling; at production sizes this would grow an (M, N)
# grid with (128, 128)-aligned blocks.
# ---------------------------------------------------------------------------
def _matmul_bias_kernel(x_ref, w_ref, b_ref, o_ref):
    o_ref[...] = (
        jnp.dot(x_ref[...], w_ref[...], preferred_element_type=jnp.float32)
        + b_ref[...]
    ).astype(o_ref.dtype)


def _matmul_bias(x, w, b):
    m = x.shape[0]
    n = w.shape[1]
    return pl.pallas_call(
        _matmul_bias_kernel,
        out_shape=jax.ShapeDtypeStruct((m, n), x.dtype),
        in_specs=[_VMEM, _VMEM, _VMEM],
        out_specs=_VMEM,
    )(x, w, b.reshape(1, n))


# ---------------------------------------------------------------------------
# Kernel 2: the LSTM recurrence (the only truly sequential part).
#   xp    : (T, B, 4H)  pre-computed  x_t @ W_ih^T + b_ih + b_hh
#   whh_t : (H, 4H)     W_hh^T
#   h0/c0 : (B, H)
# Outputs: out (T, B, H), h_n (B, H), c_n (B, H)
# ---------------------------------------------------------------------------
def _lstm_recurrence_kernel(xp_ref, whh_ref, h0_ref, c0_ref,
                            out_ref, h_out_ref, c_out_ref):
    seq_len = xp_ref.shape[0]
    hidden = h0_ref.shape[-1]
    whh = whh_ref[...]  # load recurrent weights once, reuse every step

    def step(t, carry):
        h, c = carry
        # Per-step critical path: one (B,H)x(H,4H) MXU matmul + VPU/EUP gates.
        gates = xp_ref[t] + jnp.dot(h, whh, preferred_element_type=jnp.float32)
        # Transcendentals on the full (B, 4H) block, then slice the gates.
        sig = jax.nn.sigmoid(gates)
        tnh = jnp.tanh(gates)
        i_g = sig[:, 0 * hidden:1 * hidden]
        f_g = sig[:, 1 * hidden:2 * hidden]
        g_g = tnh[:, 2 * hidden:3 * hidden]
        o_g = sig[:, 3 * hidden:4 * hidden]
        c_new = f_g * c + i_g * g_g
        h_new = o_g * jnp.tanh(c_new)
        out_ref[t] = h_new.astype(out_ref.dtype)
        return h_new, c_new

    h0 = h0_ref[...].astype(jnp.float32)
    c0 = c0_ref[...].astype(jnp.float32)
    # Fully-unrolled in-kernel loop; (h, c) stay in vregs across steps.
    h_n, c_n = jax.lax.fori_loop(0, seq_len, step, (h0, c0), unroll=True)

    # Final state written exactly once (not every step).
    h_out_ref[...] = h_n.astype(h_out_ref.dtype)
    c_out_ref[...] = c_n.astype(c_out_ref.dtype)


def _lstm_recurrence(xp, whh_t, h0, c0):
    seq_len, batch, four_h = xp.shape
    hidden = four_h // 4
    return pl.pallas_call(
        _lstm_recurrence_kernel,
        out_shape=(
            jax.ShapeDtypeStruct((seq_len, batch, hidden), xp.dtype),
            jax.ShapeDtypeStruct((batch, hidden), xp.dtype),
            jax.ShapeDtypeStruct((batch, hidden), xp.dtype),
        ),
        in_specs=[_VMEM, _VMEM, _VMEM, _VMEM],
        out_specs=(_VMEM, _VMEM, _VMEM),
    )(xp, whh_t, h0, c0)


# ---------------------------------------------------------------------------
# Full MDN-RNN forward (matches MDNRNN.forward: returns pi, mu, logsigma, h, c)
# ---------------------------------------------------------------------------
def mdnrnn_forward(z, a, h, c, params, *, num_mixtures=5):
    x = jnp.concatenate([z, a], axis=2)                  # (T, B, D)
    seq_len, batch, in_dim = x.shape
    hidden = h.shape[-1]
    z_size = z.shape[-1]

    lstm_p, mdn_p = params["lstm"], params["mdn"]
    wih_t = lstm_p["w_ih"].T                             # (D, 4H)
    whh_t = lstm_p["w_hh"].T                             # (H, 4H)
    bias = lstm_p["b_ih"] + lstm_p["b_hh"]               # (4H,)

    # (1) Hoisted input projection: one big matmul over all timesteps.
    xp = _matmul_bias(x.reshape(seq_len * batch, in_dim), wih_t, bias)
    xp = xp.reshape(seq_len, batch, 4 * hidden)

    # (2) Sequential part: LSTM recurrence, fused into one kernel invocation.
    out, h_n, c_n = _lstm_recurrence(xp, whh_t, h[0], c[0])

    # (3) MDN head: one big matmul over all timesteps, split in the wrapper.
    wfc_t = mdn_p["w_fc"].T                              # (H, O)
    mdn_out = _matmul_bias(out.reshape(seq_len * batch, hidden), wfc_t,
                           mdn_p["b_fc"])
    mdn_out = mdn_out.reshape(seq_len, batch, -1)

    pdim = num_mixtures * z_size
    pi = mdn_out[:, :, 0 * pdim:1 * pdim]
    mu = mdn_out[:, :, 1 * pdim:2 * pdim]
    logsigma = mdn_out[:, :, 2 * pdim:3 * pdim]
    return pi, mu, logsigma, h_n[None], c_n[None]


# ---------------------------------------------------------------------------
# Parameter init matching PyTorch defaults (uniform(-1/sqrt(H), 1/sqrt(H))).
# ---------------------------------------------------------------------------
def init_params(key, z_size, a_size, hidden_size, num_mixtures,
                dtype=jnp.float32):
    in_dim = z_size + a_size
    out_dim = 3 * num_mixtures * z_size
    k = 1.0 / math.sqrt(hidden_size)
    ks = jax.random.split(key, 6)
    lstm = {
        "w_ih": jax.random.uniform(ks[0], (4 * hidden_size, in_dim), dtype, -k, k),
        "w_hh": jax.random.uniform(ks[1], (4 * hidden_size, hidden_size), dtype, -k, k),
        "b_ih": jax.random.uniform(ks[2], (4 * hidden_size,), dtype, -k, k),
        "b_hh": jax.random.uniform(ks[3], (4 * hidden_size,), dtype, -k, k),
    }
    mdn = {
        "w_fc": jax.random.uniform(ks[4], (out_dim, hidden_size), dtype, -k, k),
        "b_fc": jax.random.uniform(ks[5], (out_dim,), dtype, -k, k),
    }
    return {"lstm": lstm, "mdn": mdn}


# ---------------------------------------------------------------------------
# Pure-JAX reference with identical semantics (for the correctness check).
# ---------------------------------------------------------------------------
def _reference_mdnrnn(z, a, h, c, params, *, num_mixtures=5):
    x = jnp.concatenate([z, a], axis=2)
    hidden = h.shape[-1]
    z_size = z.shape[-1]
    lstm_p, mdn_p = params["lstm"], params["mdn"]
    wih_t = lstm_p["w_ih"].T
    whh_t = lstm_p["w_hh"].T
    bias = lstm_p["b_ih"] + lstm_p["b_hh"]

    def step(carry, x_t):
        h_t, c_t = carry
        gates = x_t @ wih_t + h_t @ whh_t + bias
        i_g = jax.nn.sigmoid(gates[:, 0 * hidden:1 * hidden])
        f_g = jax.nn.sigmoid(gates[:, 1 * hidden:2 * hidden])
        g_g = jnp.tanh(gates[:, 2 * hidden:3 * hidden])
        o_g = jax.nn.sigmoid(gates[:, 3 * hidden:4 * hidden])
        c_new = f_g * c_t + i_g * g_g
        h_new = o_g * jnp.tanh(c_new)
        return (h_new, c_new), h_new

    (h_n, c_n), out = jax.lax.scan(step, (h[0], c[0]), x)
    mdn_out = jnp.einsum("tbh,oh->tbo", out, mdn_p["w_fc"]) + mdn_p["b_fc"]
    pdim = num_mixtures * z_size
    return (mdn_out[:, :, :pdim], mdn_out[:, :, pdim:2 * pdim],
            mdn_out[:, :, 2 * pdim:3 * pdim], h_n[None], c_n[None])


if __name__ == "__main__":
    # Small shapes consistent with MDNRNN.forward (hidden scaled down to 32).
    z_size, a_size, hidden_size, num_mixtures = 32, 3, 32, 5
    seq_len, batch = 8, 2

    key = jax.random.PRNGKey(0)
    kp, kz, ka, kh, kc = jax.random.split(key, 5)

    params = init_params(kp, z_size, a_size, hidden_size, num_mixtures)
    z = jax.random.normal(kz, (seq_len, batch, z_size), jnp.float32)
    a = jax.random.normal(ka, (seq_len, batch, a_size), jnp.float32)
    h = jax.random.normal(kh, (1, batch, hidden_size), jnp.float32)
    c = jax.random.normal(kc, (1, batch, hidden_size), jnp.float32)

    outs = mdnrnn_forward(z, a, h, c, params, num_mixtures=num_mixtures)
    jax.block_until_ready(outs)

    # Silent correctness check against the pure-JAX reference.
    refs = _reference_mdnrnn(z, a, h, c, params, num_mixtures=num_mixtures)
    for got, want in zip(outs, refs):
        assert got.shape == want.shape, (got.shape, want.shape)
        assert jnp.allclose(got, want, atol=2e-5, rtol=2e-5), float(
            jnp.max(jnp.abs(got - want)))

    print("KERNEL_OK")
</pallas_src>

<mosaic_0001>
module attributes {stable_mosaic.version = 11 : i64} {
  func.func @_matmul_bias_kernel(%arg0: memref<16x35xf32, #tpu.memory_space<vmem>>, %arg1: memref<35x128xf32, #tpu.memory_space<vmem>>, %arg2: memref<1x128xf32, #tpu.memory_space<vmem>>, %arg3: memref<16x128xf32, #tpu.memory_space<vmem>>) attributes {dimension_semantics = [], scalar_prefetch = 0 : i64, scratch_operands = 0 : i64, tpu.core_type = #tpu.core_type<tc>} {
    %c0 = arith.constant 0 : index
    %c0_0 = arith.constant 0 : index
    %0 = vector.load %arg0[%c0, %c0_0] : memref<16x35xf32, #tpu.memory_space<vmem>>, vector<16x35xf32>
    %c0_1 = arith.constant 0 : index
    %c0_2 = arith.constant 0 : index
    %1 = vector.load %arg1[%c0_1, %c0_2] : memref<35x128xf32, #tpu.memory_space<vmem>>, vector<35x128xf32>
    %cst = arith.constant dense<0.000000e+00> : vector<16x128xf32>
    %2 = tpu.matmul %0, %1, %cst {dimension_numbers = #tpu.dot_dimension_numbers<[1], [0], [0], [1], [0, 0, 1, 1], [], []>} : vector<16x35xf32>, vector<35x128xf32>, vector<16x128xf32> -> vector<16x128xf32>
    %c0_3 = arith.constant 0 : index
    %c0_4 = arith.constant 0 : index
    %3 = vector.load %arg2[%c0_3, %c0_4] : memref<1x128xf32, #tpu.memory_space<vmem>>, vector<1x128xf32>
    %4 = vector.broadcast %3 : vector<1x128xf32> to vector<16x128xf32>
    %5 = arith.addf %2, %4 : vector<16x128xf32>
    %c0_5 = arith.constant 0 : index
    %c0_6 = arith.constant 0 : index
    %6 = vector.load %arg3[%c0_5, %c0_6] : memref<16x128xf32, #tpu.memory_space<vmem>>, vector<16x128xf32>
    tpu.vector_store %arg3[%c0_5, %c0_6], %5 {strides = array<i32>} : memref<16x128xf32, #tpu.memory_space<vmem>>, vector<16x128xf32>,
    return
  }
}

</mosaic_0001>

<llo_original>
// kernel: tpu_custom_call.1
$region0: #{tpu_custom_call.1}
  #allocation0 [shape = 'u32[]', space=smem, size = 0x4, offset = 0x4, fixed_abs, tag = 'smem constant byte address 0x4 - core index']
  #allocation1 [shape = 'u32[72,128]{1,0:T(1,128)}', space=vmem, size = 0x9000, scoped, tag = 'internal scratch']
  %s0 = inlined_call_operand.hbm [shape: f32[16,35], index: 0, kind: input, shape index: {}]
  %s1 = inlined_call_operand.hbm [shape: f32[35,128], index: 1, kind: input, shape index: {}]
  %s2 = inlined_call_operand.vmem [shape: f32[1,128], index: 2, kind: input, shape index: {}]
  %s3 = inlined_call_operand.hbm [shape: f32[16,128], index: 3, kind: output, shape index: {}]
  %s4 = sld [smem:[#allocation0]]
  $region30: #{tpu_custom_call.1} parent=0
    _
  %s6 = ssub.s32 1, %s4
  %s7 = scalar_select 0, %s6, %s4
  $region1: #{tpu_custom_call.1} parent=0
    #allocation2 [shape = 'u8[8192]{0}', space=vmem, size = 0x2000, scoped, tag = 'input window, operand 0, single buffered']
    #allocation3 [shape = 's32[1]{0}', space=sflag, size = 0x4, scoped, tag = 'scoped memory for tpu_custom_call.1']
    #allocation4 [shape = 's32[1]{0}', space=sflag, size = 0x4, scoped, tag = 'scoped memory for tpu_custom_call.1']
    #allocation5 [shape = 'u8[20480]{0}', space=vmem, size = 0x5000, scoped, tag = 'input window, operand 1, single buffered']
    #allocation6 [shape = 's32[1]{0}', space=sflag, size = 0x4, scoped, tag = 'scoped memory for tpu_custom_call.1']
    #allocation7 [shape = 'u8[8192]{0}', space=vmem, size = 0x2000, scoped, tag = 'output window, operand 0, single buffered']
    %8 = vsyncpa [#allocation3], 0
    %9 = vsyncpa [#allocation6], 0
    %10 = vsyncpa [#allocation4], 0
    // Predicated region
    $region2: #{tpu_custom_call.1} parent=1 // pred_check
      _
    $region3: #{tpu_custom_call.1} parent=1 // pred_check_branch
      %12 = sbr.rel (0) target = $region5
    $region4: #{tpu_custom_call.1} parent=1 // pred_region
      %14 = vsyncadd [#allocation3], 0
      %s15 = sshll.u32 %s0, 4
      %s16 = int_to_ptr.hbm [resolvable:$true] %s15
      %s17 = sshll.u32 [#allocation2], 4
      %s18 = int_to_ptr.vmem [resolvable:$true] %s17
      %23 = dma.hbm_to_vmem [thread:$0]  %s16, 256, %s18, [#allocation3], 128, 128, 8
    $region5: #{tpu_custom_call.1} parent=1 // pred_fallthru
      _
    // Predicated region
    $region6: #{tpu_custom_call.1} parent=1 // pred_check
      _
    $region7: #{tpu_custom_call.1} parent=1 // pred_check_branch
      %25 = sbr.rel (0) target = $region9
    $region8: #{tpu_custom_call.1} parent=1 // pred_region
      %27 = vsyncadd [#allocation6], 0
      %s28 = sshll.u32 %s1, 4
      %s29 = int_to_ptr.hbm [resolvable:$true] %s28
      %s30 = sshll.u32 [#allocation5], 4
      %s31 = int_to_ptr.vmem [resolvable:$true] %s30
      %36 = dma.hbm_to_vmem [thread:$0]  %s29, 640, %s31, [#allocation6], 128, 128, 8
    $region9: #{tpu_custom_call.1} parent=1 // pred_fallthru
      _
    // Predicated region
    $region10: #{tpu_custom_call.1} parent=1 // pred_check
      _
    $region11: #{tpu_custom_call.1} parent=1 // pred_check_branch
      %38 = sbr.rel (0) target = $region13
    $region12: #{tpu_custom_call.1} parent=1 // pred_region
      _
    $region13: #{tpu_custom_call.1} parent=1 // pred_fallthru
      _
    // Predicated region
    $region14: #{tpu_custom_call.1} parent=1 // pred_check
      _
    $region15: #{tpu_custom_call.1} parent=1 // pred_check_branch
      %40 = sbr.rel (0) target = $region17
    $region16: #{tpu_custom_call.1} parent=1 // pred_region
      %42 = dma.done [#allocation3], 256
    $region17: #{tpu_custom_call.1} parent=1 // pred_fallthru
      _
    // Predicated region
    $region18: #{tpu_custom_call.1} parent=1 // pred_check
      _
    $region19: #{tpu_custom_call.1} parent=1 // pred_check_branch
      %44 = sbr.rel (0) target = $region21
    $region20: #{tpu_custom_call.1} parent=1 // pred_region
      %46 = dma.done [#allocation6], 640
    $region21: #{tpu_custom_call.1} parent=1 // pred_fallthru
      _
    %v47 = vld [vmem:[#allocation2] sm:$0xff]
    %v48 = vld [vmem:[#allocation2 + $0x8] sm:$0xff]
    %v49 = vld [vmem:[#allocation5] sm:$0xff]
    %v50 = vld [vmem:[#allocation5 + $0x8] sm:$0xff]
    %v51 = vld [vmem:[#allocation5 + $0x10] sm:$0xff]
    %v52 = vld [vmem:[#allocation5 + $0x18] sm:$0xff]
    %v53 = vld [vmem:[#allocation5 + $0x20] sm:$0x7]
    %v54 = vld [vmem:[%s2] sm:$0x1]
    %v56 = vperm.slane %v54, 0
    %vm58 = vcmask 285696
    %v60 = vsel %vm58, %v47, 0
    %v63 = vsel %vm58, %v48, 0
    %vm65 = vcmask 1042432
    %v67 = vsel %vm65, %v53, 0
    %69 = vmatpush.msra.mxu0 0.0
    %70 = vmatpush.msra.mxu0 0.0
    %71 = vmatpush.msra.mxu0 0.0
    %72 = vmatpush.msra.mxu0 0.0
    %73 = vmatpush.msra.mxu0 0.0
    %74 = vmatpush.msra.mxu0 0.0
    %75 = vmatpush.msra.mxu0 0.0
    %76 = vmatpush.msra.mxu0 0.0
    %77 = vmatpush.msra.mxu0 0.0
    %78 = vmatpush.msra.mxu0 0.0
    %79 = vmatpush.msra.mxu0 0.0
    %80 = vmatpush.msra.mxu0 %v67
    %81 = vmatpush.msra.mxu0 %v52
    %82 = vmatpush.msra.mxu0 %v51
    %83 = vmatpush.msra.mxu0 %v50
    %84 = vmatpush.msra.mxu0 %v49
    %85 = vmatmul.f32.gmra.mxu0 %v60
    %v86 = vpop.f32.mrf.mxu0
    %v87 = vadd.f32 %v56, %v86
    %88 = vmatmul.f32.gmra.mxu0 %v63
    %v89 = vpop.f32.mrf.mxu0
    %v90 = vadd.f32 %v56, %v89
    %91 = vdwg.mxu0
    %92 = vst [vmem:[#allocation7] sm:$0xff] %v87
    %93 = vst [vmem:[#allocation7 + $0x8] sm:$0xff] %v90
    // Predicated region
    $region22: #{tpu_custom_call.1} parent=1 // pred_check
      _
    $region23: #{tpu_custom_call.1} parent=1 // pred_check_branch
      %95 = sbr.rel (0) target = $region25
    $region24: #{tpu_custom_call.1} parent=1 // pred_region
      %97 = vsyncadd [#allocation4], 0
      %s98 = sshll.u32 [#allocation7], 4
      %s99 = int_to_ptr.vmem [resolvable:$true] %s98
      %s100 = sshll.u32 %s3, 4
      %s101 = int_to_ptr.hbm [resolvable:$true] %s100
      %106 = dma.vmem_to_hbm [thread:$0]  %s99, 256, %s101, [#allocation4], 128, 128, 8
    $region25: #{tpu_custom_call.1} parent=1 // pred_fallthru
      _
    // Predicated region
    $region26: #{tpu_custom_call.1} parent=1 // pred_check
      _
    $region27: #{tpu_custom_call.1} parent=1 // pred_check_branch
      %108 = sbr.rel (0) target = $region29
    $region28: #{tpu_custom_call.1} parent=1 // pred_region
      %110 = dma.done [#allocation4], 256
    $region29: #{tpu_custom_call.1} parent=1 // pred_fallthru
      _
    %111 = vsyncpa [#allocation3], 1
    %112 = vsyncpa [#allocation6], 1
    %113 = vsyncpa [#allocation4], 1

</llo_original>
